<compile_context>
chip_gen: v5e
topology: v5e:2x2
jax: 0.10.0
libtpu: 0.0.40
codegen_flags: <defaults>
</compile_context>

<pallas_src>
import functools

import jax
import jax.numpy as jnp
from jax import lax
from jax.experimental import pallas as pl
from jax.experimental.pallas import tpu as pltpu


def _kldiv_kernel(logits_ref, targets_ref, out_ref, *, inv_t, n_rows):
    tile_n = logits_ref.shape[0]

    lg = logits_ref[...].astype(jnp.float32) * inv_t
    tg = targets_ref[...].astype(jnp.float32) * inv_t

    # Row-wise (class axis) stabilized softmax statistics.
    lg_shift = lg - jnp.max(lg, axis=1, keepdims=True)
    tg_shift = tg - jnp.max(tg, axis=1, keepdims=True)
    tg_exp = jnp.exp(tg_shift)
    z_q = jnp.sum(jnp.exp(lg_shift), axis=1, keepdims=True)
    z_p = jnp.sum(tg_exp, axis=1, keepdims=True)

    # kl_row = sum_c p * (log p - log q)
    #        = [sum_c tg_exp * (tg_shift - lg_shift)] / z_p
    #          + (log z_q - log z_p)              (since sum_c p_c == 1)
    s = jnp.sum(tg_exp * (tg_shift - lg_shift), axis=1, keepdims=True)
    kl_row = s * pl.reciprocal(z_p, approx=False) + (jnp.log(z_q) - jnp.log(z_p))

    if n_rows % tile_n != 0:  # static: last (partial) tile has garbage rows
        row_ids = pl.program_id(0) * tile_n + lax.broadcasted_iota(
            jnp.int32, (tile_n, 1), 0
        )
        kl_row = jnp.where(row_ids < n_rows, kl_row, 0.0)

    out_ref[...] = kl_row


def _round_up(x, m):
    return (x + m - 1) // m * m


def kldiv_pallas(logits, targets, T=1.0, reduction="batchmean"):
    """KL(softmax(targets/T) || softmax(logits/T)) * T^2, PyTorch-style.

    Feed bf16 inputs directly if available (halves HBM traffic); math is f32
    inside the kernel.
    """
    assert logits.shape == targets.shape and logits.ndim == 2
    n, c = logits.shape

    itemsize = jnp.dtype(logits.dtype).itemsize
    # Sublane granularity: 8 for 32-bit, 16 for 16-bit, 32 for 8-bit dtypes.
    sub = max(8, 32 // max(1, itemsize))

    # Per-row VMEM cost: 2 inputs x 2 pipeline buffers x itemsize
    #                    + ~4 whole-tile f32 temporaries (lg/tg shift, exps).
    per_row_bytes = 4 * c * itemsize + 4 * c * 4
    vmem_budget = 12 * 1024 * 1024  # < v5e's 16 MiB scoped default
    max_rows = max(sub, (vmem_budget // per_row_bytes) // sub * sub)
    # TODO(synk): for vocab-scale C (>~45K classes) add a second "arbitrary"
    # class-dim grid axis with online (flash-softmax style) accumulation so
    # VMEM use is bounded independently of C.

    tile_n = min(_round_up(n, sub), int(max_rows))
    if n >= 2 * sub:
        # Keep >= 2 tiles so v7x's two TensorCores both get work.
        tile_n = min(tile_n, _round_up(-(-n // 2), sub))
    tile_n = int(max(sub, tile_n))
    num_tiles = -(-n // tile_n)

    kernel = functools.partial(_kldiv_kernel, inv_t=1.0 / float(T), n_rows=n)

    bytes_accessed = int(2 * n * c * itemsize + num_tiles * tile_n * 4)
    kl_rows = pl.pallas_call(
        kernel,
        out_shape=jax.ShapeDtypeStruct((num_tiles * tile_n, 1), jnp.float32),
        grid=(num_tiles,),
        in_specs=[
            pl.BlockSpec((tile_n, c), lambda i: (i, 0)),
            pl.BlockSpec((tile_n, c), lambda i: (i, 0)),
        ],
        out_specs=pl.BlockSpec((tile_n, 1), lambda i: (i, 0)),
        compiler_params=pltpu.CompilerParams(dimension_semantics=("parallel",)),
        cost_estimate=pl.CostEstimate(
            flops=int(12 * n * c),
            transcendentals=int(2 * n * c),
            bytes_accessed=bytes_accessed,
        ),
    )(logits, targets)

    # Tiny final reduction + scaling in XLA (partials keep the grid parallel).
    total = jnp.sum(kl_rows)
    t2 = jnp.float32(T * T)
    if reduction == "batchmean":
        return total * (t2 / n)
    elif reduction == "sum":
        return total * t2
    elif reduction == "mean":
        return total * (t2 / (n * c))
    else:
        raise ValueError(f"unsupported reduction: {reduction}")


class KLDiv:
    """JAX/Pallas port of datafree.criterions.KLDiv."""

    def __init__(self, T=1.0, reduction="batchmean"):
        self.T = T
        self.reduction = reduction

    def __call__(self, logits, targets):
        return kldiv_pallas(logits, targets, T=self.T, reduction=self.reduction)


def _kldiv_ref(logits, targets, T=1.0, reduction="batchmean"):
    # Pure-JAX reference for validation.
    logits = logits.astype(jnp.float32)
    targets = targets.astype(jnp.float32)
    log_q = jax.nn.log_softmax(logits / T, axis=1)
    p = jax.nn.softmax(targets / T, axis=1)
    log_p = jax.nn.log_softmax(targets / T, axis=1)
    kl = p * (log_p - log_q)
    if reduction == "batchmean":
        out = jnp.sum(kl) / logits.shape[0]
    elif reduction == "sum":
        out = jnp.sum(kl)
    else:  # mean
        out = jnp.mean(kl)
    return out * (T * T)


if __name__ == "__main__":
    key = jax.random.PRNGKey(0)
    k1, k2, k3, k4 = jax.random.split(key, 4)

    # Case 1: small KD shapes (batch=8 rows of 32-class logits), f32.
    N, C = 8, 32
    logits = jax.random.normal(k1, (N, C), dtype=jnp.float32) * 2.0
    targets = jax.random.normal(k2, (N, C), dtype=jnp.float32) * 2.0

    criterion = KLDiv(T=4.0, reduction="batchmean")
    loss = jax.block_until_ready(criterion(logits, targets))
    ref = _kldiv_ref(logits, targets, T=4.0, reduction="batchmean")
    assert jnp.allclose(loss, ref, rtol=1e-4, atol=1e-5), (loss, ref)

    loss_sum = jax.block_until_ready(
        kldiv_pallas(logits, targets, T=4.0, reduction="sum")
    )
    ref_sum = _kldiv_ref(logits, targets, T=4.0, reduction="sum")
    assert jnp.allclose(loss_sum, ref_sum, rtol=1e-4, atol=1e-5), (loss_sum, ref_sum)

    # Case 2: C not a multiple of 128 (exercises the ragged-lane path with no
    # caller-side pad) and a batch that forces >=2 tiles with a partial last
    # tile (exercises the row mask + megacore split).
    N2, C2 = 24, 100
    logits2 = jax.random.normal(k3, (N2, C2), dtype=jnp.float32) * 2.0
    targets2 = jax.random.normal(k4, (N2, C2), dtype=jnp.float32) * 2.0
    loss2 = jax.block_until_ready(kldiv_pallas(logits2, targets2, T=2.0))
    ref2 = _kldiv_ref(logits2, targets2, T=2.0)
    assert jnp.allclose(loss2, ref2, rtol=1e-4, atol=1e-5), (loss2, ref2)

    loss2m = jax.block_until_ready(
        kldiv_pallas(logits2, targets2, T=2.0, reduction="mean")
    )
    ref2m = _kldiv_ref(logits2, targets2, T=2.0, reduction="mean")
    assert jnp.allclose(loss2m, ref2m, rtol=1e-4, atol=1e-5), (loss2m, ref2m)

    # Case 3: bf16 inputs fed directly (no wrapper cast), smoke + accuracy.
    loss_bf16 = jax.block_until_ready(
        kldiv_pallas(
            logits2.astype(jnp.bfloat16), targets2.astype(jnp.bfloat16), T=2.0
        )
    )
    assert jnp.isfinite(loss_bf16), loss_bf16
    assert jnp.allclose(loss_bf16, ref2, rtol=5e-2, atol=5e-3), (loss_bf16, ref2)

    print("KERNEL_OK")
</pallas_src>

<mosaic_0001>
module attributes {stable_mosaic.version = 11 : i64} {
  func.func @_kldiv_kernel(%arg0: i32, %arg1: memref<8x32xf32, #tpu.memory_space<vmem>>, %arg2: memref<8x32xf32, #tpu.memory_space<vmem>>, %arg3: memref<8x1xf32, #tpu.memory_space<vmem>>) attributes {dimension_semantics = [#tpu.dimension_semantics<parallel>], iteration_bounds = array<i64: 1>, scalar_prefetch = 0 : i64, scratch_operands = 0 : i64, tpu.core_type = #tpu.core_type<tc>, window_params = [{transform_indices = @transform_0, window_bounds = array<i64: 8, 32>}, {transform_indices = @transform_1, window_bounds = array<i64: 8, 32>}, {transform_indices = @transform_2, window_bounds = array<i64: 8, 1>}]} {
    %c0 = arith.constant 0 : index
    %c0_0 = arith.constant 0 : index
    %0 = vector.load %arg1[%c0, %c0_0] : memref<8x32xf32, #tpu.memory_space<vmem>>, vector<8x32xf32>
    %cst = arith.constant 2.500000e-01 : f32
    %1 = vector.broadcast %cst : f32 to vector<8x32xf32>
    %2 = arith.mulf %0, %1 : vector<8x32xf32>
    %c0_1 = arith.constant 0 : index
    %c0_2 = arith.constant 0 : index
    %3 = vector.load %arg2[%c0_1, %c0_2] : memref<8x32xf32, #tpu.memory_space<vmem>>, vector<8x32xf32>
    %cst_3 = arith.constant 2.500000e-01 : f32
    %4 = vector.broadcast %cst_3 : f32 to vector<8x32xf32>
    %5 = arith.mulf %3, %4 : vector<8x32xf32>
    %cst_4 = arith.constant dense<0xFF800000> : vector<8xf32>
    %6 = vector.multi_reduction <maximumf>, %2, %cst_4 [1] : vector<8x32xf32> to vector<8xf32>
    %7 = vector.shape_cast %6 : vector<8xf32> to vector<8x1xf32>
    %8 = vector.broadcast %7 : vector<8x1xf32> to vector<8x32xf32>
    %9 = arith.subf %2, %8 : vector<8x32xf32>
    %cst_5 = arith.constant dense<0xFF800000> : vector<8xf32>
    %10 = vector.multi_reduction <maximumf>, %5, %cst_5 [1] : vector<8x32xf32> to vector<8xf32>
    %11 = vector.shape_cast %10 : vector<8xf32> to vector<8x1xf32>
    %12 = vector.broadcast %11 : vector<8x1xf32> to vector<8x32xf32>
    %13 = arith.subf %5, %12 : vector<8x32xf32>
    %14 = math.exp %13 : vector<8x32xf32>
    %15 = math.exp %9 : vector<8x32xf32>
    %cst_6 = arith.constant dense<0.000000e+00> : vector<8xf32>
    %16 = vector.multi_reduction <add>, %15, %cst_6 [1] : vector<8x32xf32> to vector<8xf32>
    %17 = vector.shape_cast %16 : vector<8xf32> to vector<8x1xf32>
    %cst_7 = arith.constant dense<0.000000e+00> : vector<8xf32>
    %18 = vector.multi_reduction <add>, %14, %cst_7 [1] : vector<8x32xf32> to vector<8xf32>
    %19 = vector.shape_cast %18 : vector<8xf32> to vector<8x1xf32>
    %20 = arith.subf %13, %9 : vector<8x32xf32>
    %21 = arith.mulf %14, %20 : vector<8x32xf32>
    %cst_8 = arith.constant dense<0.000000e+00> : vector<8xf32>
    %22 = vector.multi_reduction <add>, %21, %cst_8 [1] : vector<8x32xf32> to vector<8xf32>
    %23 = vector.shape_cast %22 : vector<8xf32> to vector<8x1xf32>
    %24 = tpu.reciprocal %19 : vector<8x1xf32> -> vector<8x1xf32>
    %25 = arith.mulf %23, %24 : vector<8x1xf32>
    %26 = math.log %17 : vector<8x1xf32>
    %27 = math.log %19 : vector<8x1xf32>
    %28 = arith.subf %26, %27 : vector<8x1xf32>
    %29 = arith.addf %25, %28 : vector<8x1xf32>
    %c0_9 = arith.constant 0 : index
    %c0_10 = arith.constant 0 : index
    %30 = vector.load %arg3[%c0_9, %c0_10] : memref<8x1xf32, #tpu.memory_space<vmem>>, vector<8x1xf32>
    tpu.vector_store %arg3[%c0_9, %c0_10], %29 {strides = array<i32>} : memref<8x1xf32, #tpu.memory_space<vmem>>, vector<8x1xf32>,
    return
  }
  func.func @transform_0(%arg0: i32) -> (i32, i32) {
    %c0_i32 = arith.constant 0 : i32
    %c0_i32_0 = arith.constant 0 : i32
    return %arg0, %c0_i32 : i32, i32
  }
  func.func @transform_1(%arg0: i32) -> (i32, i32) {
    %c0_i32 = arith.constant 0 : i32
    %c0_i32_0 = arith.constant 0 : i32
    return %arg0, %c0_i32 : i32, i32
  }
  func.func @transform_2(%arg0: i32) -> (i32, i32) {
    %c0_i32 = arith.constant 0 : i32
    %c0_i32_0 = arith.constant 0 : i32
    return %arg0, %c0_i32 : i32, i32
  }
}

</mosaic_0001>

<llo_original>
// kernel: tpu_custom_call.1
$region0: #{tpu_custom_call.1}
  #allocation0 [shape = 'u32[]', space=smem, size = 0x4, offset = 0x4, fixed_abs, tag = 'smem constant byte address 0x4 - core index']
  #allocation1 [shape = 'u32[72,128]{1,0:T(1,128)}', space=vmem, size = 0x9000, scoped, tag = 'internal scratch']
  %s0 = inlined_call_operand.hbm [shape: f32[8,32], index: 0, kind: input, shape index: {}]
  %s1 = inlined_call_operand.hbm [shape: f32[8,32], index: 1, kind: input, shape index: {}]
  %s2 = inlined_call_operand.vmem [shape: f32[8,1], index: 2, kind: output, shape index: {}]
  %s3 = sld [smem:[#allocation0]]
  $region26: #{tpu_custom_call.1} parent=0
    _
  %s5 = ssub.s32 1, %s3
  %s6 = scalar_select 0, %s5, %s3
  $region1: #{tpu_custom_call.1} parent=0
    #allocation2 [shape = 'u8[4096]{0}', space=vmem, size = 0x1000, scoped, tag = 'input window, operand 0, single buffered']
    #allocation3 [shape = 's32[1]{0}', space=sflag, size = 0x4, scoped, tag = 'scoped memory for tpu_custom_call.1']
    #allocation4 [shape = 'u8[4096]{0}', space=vmem, size = 0x1000, scoped, tag = 'input window, operand 1, single buffered']
    #allocation5 [shape = 's32[1]{0}', space=sflag, size = 0x4, scoped, tag = 'scoped memory for tpu_custom_call.1']
    %7 = vsyncpa [#allocation3], 0
    %8 = vsyncpa [#allocation5], 0
    // Predicated region
    $region2: #{tpu_custom_call.1} parent=1 // pred_check
      _
    $region3: #{tpu_custom_call.1} parent=1 // pred_check_branch
      %10 = sbr.rel (0) target = $region5
    $region4: #{tpu_custom_call.1} parent=1 // pred_region
      %12 = vsyncadd [#allocation3], 0
      %s14 = sshll.u32 %s0, 4
      %s15 = int_to_ptr.hbm [resolvable:$true] %s14
      %s16 = sshll.u32 [#allocation2], 4
      %s17 = int_to_ptr.vmem [resolvable:$true] %s16
      %19 = dma.hbm_to_vmem [thread:$0]  %s15, 128, %s17, [#allocation3]
    $region5: #{tpu_custom_call.1} parent=1 // pred_fallthru
      _
    // Predicated region
    $region6: #{tpu_custom_call.1} parent=1 // pred_check
      _
    $region7: #{tpu_custom_call.1} parent=1 // pred_check_branch
      %21 = sbr.rel (0) target = $region9
    $region8: #{tpu_custom_call.1} parent=1 // pred_region
      %23 = vsyncadd [#allocation5], 0
      %s25 = sshll.u32 %s1, 4
      %s26 = int_to_ptr.hbm [resolvable:$true] %s25
      %s27 = sshll.u32 [#allocation4], 4
      %s28 = int_to_ptr.vmem [resolvable:$true] %s27
      %30 = dma.hbm_to_vmem [thread:$0]  %s26, 128, %s28, [#allocation5]
    $region9: #{tpu_custom_call.1} parent=1 // pred_fallthru
      _
    // Predicated region
    $region10: #{tpu_custom_call.1} parent=1 // pred_check
      _
    $region11: #{tpu_custom_call.1} parent=1 // pred_check_branch
      %32 = sbr.rel (0) target = $region13
    $region12: #{tpu_custom_call.1} parent=1 // pred_region
      %34 = dma.done [#allocation3], 128
    $region13: #{tpu_custom_call.1} parent=1 // pred_fallthru
      _
    // Predicated region
    $region14: #{tpu_custom_call.1} parent=1 // pred_check
      _
    $region15: #{tpu_custom_call.1} parent=1 // pred_check_branch
      %36 = sbr.rel (0) target = $region17
    $region16: #{tpu_custom_call.1} parent=1 // pred_region
      %38 = dma.done [#allocation5], 128
    $region17: #{tpu_custom_call.1} parent=1 // pred_fallthru
      _
    %v39 = vld [vmem:[#allocation2] sm:$0xff]
    %v40 = vmul.f32 %v39, 0.25
    %v41 = vld [vmem:[#allocation4] sm:$0xff]
    %v42 = vmul.f32 %v41, 0.25
    %vm43 = vcmask 261120
    %v44 = vsel %vm43, %v40, -inf
    %45 = vmax.xlane.f32.xlu0 %v44
    %v46 = vpop.xlane.xlu0 %45
    %v47 = vsub.f32 %v40, %v46
    %v48 = vsel %vm43, %v42, -inf
    %49 = vmax.xlane.f32.xlu0 %v48
    %v50 = vpop.xlane.xlu0 %49
    %v51 = vsub.f32 %v42, %v50
    %v52 = vmul.f32 %v51, 1.442695
    %v53 = vpow.pop %v52
    %v54 = vmul.f32 %v47, 1.442695
    %v55 = vpow.pop %v54
    %v56 = vsel %vm43, %v55, 0.0
    %57 = vadd.xlane.f32.xlu0 %v56
    %v58 = vpop.xlane.xlu0 %57
    %v59 = vsel %vm43, %v53, 0.0
    %60 = vadd.xlane.f32.xlu0 %v59
    %v61 = vpop.xlane.xlu0 %60
    %v62 = vsub.f32 %v51, %v47
    %v63 = vmul.f32 %v53, %v62
    %v64 = vsel %vm43, %v63, 0.0
    %65 = vadd.xlane.f32.xlu0 %v64
    %v66 = vpop.xlane.xlu0 %65
    %v67 = vrcp.pop %v61
    %v68 = vmul.f32 %v61, %v67
    %v69 = vsub.f32 1.0, %v68
    %v70 = vmul.f32 %v67, %v69
    %v71 = vadd.f32 %v67, %v70
    %vm72 = vweird.f32 %v61
    %vm73 = vweird.f32 %v67
    %vm74 = vmor %vm72, %vm73
    %v75 = vsel %vm74, %v67, %v71
    %v76 = vand.u32 2147483647, %v61
    %vm77 = vcmp.eq.f32.partialorder %v76, 8.507059e+37
    %v78 = vand.u32 %v61, 2147483648
    %v79 = vor.u32 1.1754944e-38, %v78
    %v80 = vsel %vm77, %v79, %v75
    %v81 = vmul.f32 %v66, %v80
    %v82 = vlog2.pop %v58
    %v83 = vmul.f32 %v82, 0.6931472
    %v84 = vlog2.pop %v61
    %v85 = vmul.f32 %v84, 0.6931472
    %v86 = vsub.f32 %v83, %v85
    %v87 = vadd.f32 %v81, %v86
    %vm88 = vcmask 7168
    %89 = vst.msk [vmem:[%s2] sm:$0xff] %vm88, %v87
    // Predicated region
    $region18: #{tpu_custom_call.1} parent=1 // pred_check
      _
    $region19: #{tpu_custom_call.1} parent=1 // pred_check_branch
      %91 = sbr.rel (0) target = $region21
    $region20: #{tpu_custom_call.1} parent=1 // pred_region
      _
    $region21: #{tpu_custom_call.1} parent=1 // pred_fallthru
      _
    // Predicated region
    $region22: #{tpu_custom_call.1} parent=1 // pred_check
      _
    $region23: #{tpu_custom_call.1} parent=1 // pred_check_branch
      %93 = sbr.rel (0) target = $region25
    $region24: #{tpu_custom_call.1} parent=1 // pred_region
      _
    $region25: #{tpu_custom_call.1} parent=1 // pred_fallthru
      _
    %94 = vsyncpa [#allocation3], 1
    %95 = vsyncpa [#allocation5], 1

</llo_original>
